<compile_context>
chip_gen: v7x
topology: tpu7x:2x2x1
jax: 0.10.0
libtpu: 0.0.40
codegen_flags: <defaults>
</compile_context>

<pallas_src>
import functools

import jax
import jax.numpy as jnp
from jax.experimental import pallas as pl
from jax.experimental.pallas import tpu as pltpu

_MIB = 1024 * 1024
# Route the sigmoid divide through the approximate EUP reciprocal (vrcp). The exp is
# already on the EUP; this keeps the finalize epilogue off the VALU. ~1e-3 rel. error.
_APPROX_RECIPROCAL = True

_BATCH_TILE_CANDIDATES = (1024, 512, 256, 128, 64, 32, 16)


def _round_up(x, m):
    return ((x + m - 1) // m) * m


@functools.lru_cache(None)
def _vmem_budgets():
    """(scoped vmem_limit_bytes, fused-path budget) tuned per TPU generation."""
    phys = 0
    try:
        phys = getattr(pltpu.get_tpu_info(), "vmem_capacity_bytes", 0) or 0
    except Exception:
        phys = 0
    if phys >= 100 * _MIB:           # v5e / v6e: 128 MiB physical VMEM
        return 96 * _MIB, 72 * _MIB
    # v7x (64 MiB physical) or unknown -> conservative, safe on every generation.
    return 48 * _MIB, 36 * _MIB


def _padded_rows(batch):
    """Pad the batch UP to a batch tile that keeps the MXU busy (<= 50% extra rows)."""
    m16 = _round_up(batch, 16)       # bf16 sublane packing wants 16-row multiples
    for c in _BATCH_TILE_CANDIDATES:
        mp = _round_up(m16, c)
        if mp <= (m16 * 3) // 2:
            return mp
    return m16


def _row_tile(mp):
    """Largest batch-tile candidate that divides the (already padded) row count."""
    for c in _BATCH_TILE_CANDIDATES:
        if mp % c == 0:
            return c
    return 16


def _feature_tile(d):
    """Lane-dim tile: prefer 512/256 (v6e/v7x 256-wide MXU) but never pad past 128-multiples."""
    d128 = _round_up(d, 128)
    for c in (512, 256):
        if d128 % c == 0:
            return c
    return 128


def _pad2(a, rows, cols):
    r, c = a.shape
    if r == rows and c == cols:
        return a
    return jnp.pad(a, ((0, rows - r), (0, cols - c)))


def _sigmoid(y):
    # exp lands on the EUP; with approx=True the reciprocal also rides the EUP (vrcp),
    # keeping the VALU free in the epilogue.
    return pl.reciprocal(1.0 + jnp.exp(-y), approx=_APPROX_RECIPROCAL)


# ---------------------------------------------------------------------------
# Tiled linear + sigmoid on pre-padded operands:  sigmoid(x @ W + b)
# ---------------------------------------------------------------------------
def _linear_sigmoid_kernel(x_ref, w_ref, b_ref, o_ref, acc_ref):
    # K-tiled matmul with an f32 VMEM accumulator; bias + sigmoid only on the last K step.
    @pl.when(pl.program_id(2) == 0)
    def _init():
        acc_ref[...] = jnp.zeros_like(acc_ref)

    acc_ref[...] += jnp.dot(x_ref[...], w_ref[...],
                            preferred_element_type=jnp.float32)

    @pl.when(pl.program_id(2) == pl.num_programs(2) - 1)
    def _finalize():
        y = acc_ref[...] + b_ref[...]          # (1, tn) f32 bias broadcasts over rows
        o_ref[...] = _sigmoid(y).astype(o_ref.dtype)


def _linear_sigmoid_padded(xp, wp, bp, out_dtype):
    """sigmoid(xp @ wp + bp) on pre-padded operands.

    xp: [Mp, Kp] (compute dtype), wp: [Kp, Np] (compute dtype), bp: [1, Np] (f32).
    Mp is a multiple of 16; Kp/Np are multiples of 128.  Returns [Mp, Np] in out_dtype.
    """
    Mp, Kp = xp.shape
    Np = wp.shape[1]
    tm = _row_tile(Mp)
    tk = _feature_tile(Kp)
    tn = _feature_tile(Np)
    if (Mp // tm) * (Np // tn) == 1 and tm >= 32:
        tm //= 2                                # v7x: give both TensorCores a parallel tile

    c_isz = jnp.dtype(xp.dtype).itemsize
    o_isz = jnp.dtype(out_dtype).itemsize
    cost = pl.CostEstimate(
        flops=2 * Mp * Kp * Np,
        transcendentals=Mp * Np,
        bytes_accessed=(Mp * Kp + (Mp // tm) * Kp * Np) * c_isz
        + Np * 4 + Mp * Np * o_isz,
    )
    vmem_limit, _ = _vmem_budgets()

    return pl.pallas_call(
        _linear_sigmoid_kernel,
        out_shape=jax.ShapeDtypeStruct((Mp, Np), out_dtype),
        grid_spec=pltpu.PrefetchScalarGridSpec(
            num_scalar_prefetch=0,
            grid=(Mp // tm, Np // tn, Kp // tk),          # reduction axis last
            in_specs=[
                pl.BlockSpec((tm, tk), lambda i, j, k: (i, k)),
                pl.BlockSpec((tk, tn), lambda i, j, k: (k, j)),
                pl.BlockSpec((1, tn), lambda i, j, k: (0, j)),
            ],
            out_specs=pl.BlockSpec((tm, tn), lambda i, j, k: (i, j)),
            scratch_shapes=[pltpu.VMEM((tm, tn), jnp.float32)],
        ),
        compiler_params=pltpu.CompilerParams(
            dimension_semantics=("parallel", "parallel", "arbitrary"),
            vmem_limit_bytes=vmem_limit,
        ),
        cost_estimate=cost,
    )(xp, wp, bp)


# ---------------------------------------------------------------------------
# Fused encoder + decoder (SelfTraining=True):
#   sigmoid( sigmoid(x @ We + be) @ Wd + bd )
# Weights live in VMEM as single-copy (unblocked) residents; the hidden activations
# stay in registers/VMEM values and never round-trip through HBM.
# ---------------------------------------------------------------------------
def _fused_autoencoder_kernel(x_ref, we_ref, be_ref, wd_ref, bd_ref, o_ref):
    h = jnp.dot(x_ref[...], we_ref[...], preferred_element_type=jnp.float32)
    h = _sigmoid(h + be_ref[...])
    y = jnp.dot(h.astype(wd_ref.dtype), wd_ref[...], preferred_element_type=jnp.float32)
    o_ref[...] = _sigmoid(y + bd_ref[...]).astype(o_ref.dtype)


def _fused_forward_padded(xp, wep, bep, wdp, bdp, out_dtype):
    Mp, Kp = xp.shape
    Hp = wep.shape[1]
    tm = min(_row_tile(Mp), 256)                # bound the per-tile activation footprint
    if Mp // tm == 1 and tm >= 32:
        tm //= 2                                # v7x: two parallel tiles

    c_isz = jnp.dtype(xp.dtype).itemsize
    o_isz = jnp.dtype(out_dtype).itemsize
    cost = pl.CostEstimate(
        flops=4 * Mp * Kp * Hp,
        transcendentals=Mp * (Hp + Kp),
        bytes_accessed=(Mp * Kp + 2 * Kp * Hp) * c_isz + (Hp + Kp) * 4 + Mp * Kp * o_isz,
    )
    vmem_limit, _ = _vmem_budgets()

    return pl.pallas_call(
        _fused_autoencoder_kernel,
        out_shape=jax.ShapeDtypeStruct((Mp, Kp), out_dtype),
        grid_spec=pltpu.PrefetchScalarGridSpec(
            num_scalar_prefetch=0,
            grid=(Mp // tm,),                   # weights resident across batch tiles
            in_specs=[
                pl.BlockSpec((tm, Kp), lambda i: (i, 0)),
                # Weights/biases: whole-array, unblocked VMEM residents -> a single copy
                # (not pipelined / double-buffered), per the v7x VMEM-footprint feedback.
                pl.BlockSpec(memory_space=pltpu.MemorySpace.VMEM),
                pl.BlockSpec(memory_space=pltpu.MemorySpace.VMEM),
                pl.BlockSpec(memory_space=pltpu.MemorySpace.VMEM),
                pl.BlockSpec(memory_space=pltpu.MemorySpace.VMEM),
            ],
            out_specs=pl.BlockSpec((tm, Kp), lambda i: (i, 0)),
        ),
        compiler_params=pltpu.CompilerParams(
            dimension_semantics=("parallel",),
            vmem_limit_bytes=vmem_limit,
        ),
        cost_estimate=cost,
    )(xp, wep, bep, wdp, bdp)


def _fused_vmem_bytes(Kp, Hp, c_isz, out_isz=4, tm=256):
    weights = 2 * Kp * Hp * c_isz + (Hp + Kp) * 4     # single-buffered VMEM residents
    io = 2 * tm * Kp * (c_isz + out_isz)              # double-buffered x / out batch tiles
    return weights + io


# ---------------------------------------------------------------------------
# Jitted forward paths (weights are passed pre-padded / pre-cast; padding of the
# activations and the final slice happen inside the jit so XLA fuses them).
# The decoder-weight rows for padded hidden lanes are zero, so the sigmoid(0)=0.5
# values sitting in those lanes contribute nothing to the real outputs.
# ---------------------------------------------------------------------------
@functools.partial(jax.jit, static_argnames=("out_dim",))
def _encode_fn(x, wp, bp, *, out_dim):
    B = x.shape[0]
    Mp = _padded_rows(B)
    Kp = wp.shape[0]
    xp = _pad2(x, Mp, Kp).astype(wp.dtype)
    y = _linear_sigmoid_padded(xp, wp, bp, out_dtype=x.dtype)
    return y[:B, :out_dim]


@functools.partial(jax.jit, static_argnames=("out_dim",))
def _reconstruct_fused_fn(x, wep, bep, wdp, bdp, *, out_dim):
    B = x.shape[0]
    Mp = _padded_rows(B)
    Kp = wep.shape[0]
    xp = _pad2(x, Mp, Kp).astype(wep.dtype)
    y = _fused_forward_padded(xp, wep, bep, wdp, bdp, out_dtype=x.dtype)
    return y[:B, :out_dim]


@functools.partial(jax.jit, static_argnames=("out_dim",))
def _reconstruct_twocall_fn(x, wep, bep, wdp, bdp, *, out_dim):
    B = x.shape[0]
    Mp = _padded_rows(B)
    Kp = wep.shape[0]
    xp = _pad2(x, Mp, Kp).astype(wep.dtype)
    # Keep the hidden activations padded and in compute dtype between the two calls.
    h = _linear_sigmoid_padded(xp, wep, bep, out_dtype=wep.dtype)
    y = _linear_sigmoid_padded(h, wdp, bdp, out_dtype=x.dtype)
    return y[:B, :out_dim]


# ---------------------------------------------------------------------------
# Module port
# ---------------------------------------------------------------------------
class AutoEncoderLayer:
    """JAX/Pallas port of the PyTorch AutoEncoderLayer forward pass."""

    def __init__(self, input_dim, output_dim, self_training=False, key=None,
                 compute_dtype=jnp.bfloat16):
        self.in_features = input_dim
        self.out_features = output_dim
        self.is_training_self = self_training
        # bf16 MXU operands by default (f32 accumulation kept); pass jnp.float32 if
        # full-precision operands are required.
        self.compute_dtype = compute_dtype

        if key is None:
            key = jax.random.PRNGKey(0)
        k1, k2, k3, k4 = jax.random.split(key, 4)

        # Deterministic init mimicking nn.Linear's U(-1/sqrt(fan_in), 1/sqrt(fan_in)).
        enc_bound = 1.0 / (input_dim ** 0.5)
        dec_bound = 1.0 / (output_dim ** 0.5)
        # encoder: Linear(in, out) -> stored transposed as [in, out]
        self.enc_w = jax.random.uniform(
            k1, (input_dim, output_dim), jnp.float32, -enc_bound, enc_bound)
        self.enc_b = jax.random.uniform(
            k2, (output_dim,), jnp.float32, -enc_bound, enc_bound)
        # decoder: Linear(out, in) -> stored transposed as [out, in]
        self.dec_w = jax.random.uniform(
            k3, (output_dim, input_dim), jnp.float32, -dec_bound, dec_bound)
        self.dec_b = jax.random.uniform(
            k4, (input_dim,), jnp.float32, -dec_bound, dec_bound)

        # Pad + cast ONCE (perf review item 1): feature dims to 128-multiples, weights to
        # compute dtype; biases stay f32 (added onto the f32 accumulator).
        Kp = _round_up(input_dim, 128)
        Hp = _round_up(output_dim, 128)
        self._Kp, self._Hp = Kp, Hp
        self._enc_w_p = _pad2(self.enc_w, Kp, Hp).astype(compute_dtype)
        self._enc_b_p = _pad2(self.enc_b.reshape(1, -1).astype(jnp.float32), 1, Hp)
        self._dec_w_p = _pad2(self.dec_w, Hp, Kp).astype(compute_dtype)
        self._dec_b_p = _pad2(self.dec_b.reshape(1, -1).astype(jnp.float32), 1, Kp)

        # Decide once whether the fused (no-HBM-roundtrip) reconstruction path fits VMEM.
        _, fused_budget = _vmem_budgets()
        self._use_fused = (
            _fused_vmem_bytes(Kp, Hp, jnp.dtype(compute_dtype).itemsize) <= fused_budget
        )

    def forward(self, x):
        if not self.is_training_self:
            return _encode_fn(x, self._enc_w_p, self._enc_b_p,
                              out_dim=self.out_features)
        if self._use_fused:
            return _reconstruct_fused_fn(x, self._enc_w_p, self._enc_b_p,
                                         self._dec_w_p, self._dec_b_p,
                                         out_dim=self.in_features)
        return _reconstruct_twocall_fn(x, self._enc_w_p, self._enc_b_p,
                                       self._dec_w_p, self._dec_b_p,
                                       out_dim=self.in_features)

    __call__ = forward

    @property
    def input_dim(self):
        return self.in_features

    @property
    def output_dim(self):
        return self.out_features

    @property
    def is_training_layer(self):
        return self.is_training_self

    @is_training_layer.setter
    def is_training_layer(self, other):
        self.is_training_self = bool(other)

    # TODO(synk): training machinery (BCELoss/optimizer, lock_grad/acquire_grad) is out of
    # scope for a forward-pass kernel and intentionally not ported.


if __name__ == "__main__":
    key = jax.random.PRNGKey(0)
    k_x, k_params = jax.random.split(key)

    batch, input_dim, output_dim = 8, 64, 32
    x = jax.random.normal(k_x, (batch, input_dim), jnp.float32)

    # Encoder-only path (SelfTraining=False)
    layer = AutoEncoderLayer(input_dim, output_dim, self_training=False, key=k_params)
    enc_out = jax.block_until_ready(layer(x))
    assert enc_out.shape == (batch, output_dim)

    # Reconstruction path (SelfTraining=True) — fused encoder+decoder kernel.
    layer.is_training_self = True
    rec_out = jax.block_until_ready(layer(x))
    assert rec_out.shape == (batch, input_dim)

    # Sanity-check against a plain-JAX f32 reference. bf16 MXU operands (f32 accumulate)
    # plus the approximate EUP reciprocal in the sigmoid -> tolerances relaxed vs. f32.
    ref_enc = jax.nn.sigmoid(x @ layer.enc_w + layer.enc_b)
    ref_rec = jax.nn.sigmoid(ref_enc @ layer.dec_w + layer.dec_b)
    assert jnp.allclose(enc_out.astype(jnp.float32), ref_enc, atol=3e-2, rtol=3e-2), \
        float(jnp.abs(enc_out.astype(jnp.float32) - ref_enc).max())
    assert jnp.allclose(rec_out.astype(jnp.float32), ref_rec, atol=3e-2, rtol=3e-2), \
        float(jnp.abs(rec_out.astype(jnp.float32) - ref_rec).max())

    print("KERNEL_OK")
</pallas_src>

<mosaic_0001>
module attributes {stable_mosaic.version = 11 : i64} {
  func.func @_linear_sigmoid_kernel(%arg0: i32, %arg1: i32, %arg2: i32, %arg3: memref<16x128xbf16, #tpu.memory_space<vmem>>, %arg4: memref<128x128xbf16, #tpu.memory_space<vmem>>, %arg5: memref<1x128xf32, #tpu.memory_space<vmem>>, %arg6: memref<16x128xf32, #tpu.memory_space<vmem>>, %arg7: memref<16x128xf32, #tpu.memory_space<vmem>>) attributes {dimension_semantics = [#tpu.dimension_semantics<parallel>, #tpu.dimension_semantics<parallel>, #tpu.dimension_semantics<arbitrary>], iteration_bounds = array<i64: 1, 1, 1>, scalar_prefetch = 0 : i64, scratch_operands = 1 : i64, tpu.core_type = #tpu.core_type<tc>, window_params = [{transform_indices = @transform_0, window_bounds = array<i64: 16, 128>}, {transform_indices = @transform_1, window_bounds = array<i64: 128, 128>}, {transform_indices = @transform_2, window_bounds = array<i64: 1, 128>}, {transform_indices = @transform_3, window_bounds = array<i64: 16, 128>}]} {
    %c0_i32 = arith.constant 0 : i32
    %0 = arith.cmpi eq, %arg2, %c0_i32 : i32
    %1 = arith.extui %0 : i1 to i32
    %c0_i32_0 = arith.constant 0 : i32
    %2 = arith.cmpi ne, %1, %c0_i32_0 : i32
    scf.if %2 {
      %cst_10 = arith.constant 0.000000e+00 : f32
      %12 = vector.broadcast %cst_10 : f32 to vector<16x128xf32>
      %c0_11 = arith.constant 0 : index
      %c0_12 = arith.constant 0 : index
      %13 = vector.load %arg7[%c0_11, %c0_12] : memref<16x128xf32, #tpu.memory_space<vmem>>, vector<16x128xf32>
      tpu.vector_store %arg7[%c0_11, %c0_12], %12 {strides = array<i32>} : memref<16x128xf32, #tpu.memory_space<vmem>>, vector<16x128xf32>,
    } else {
    }
    %c0 = arith.constant 0 : index
    %c0_1 = arith.constant 0 : index
    %3 = vector.load %arg7[%c0, %c0_1] : memref<16x128xf32, #tpu.memory_space<vmem>>, vector<16x128xf32>
    %c0_2 = arith.constant 0 : index
    %c0_3 = arith.constant 0 : index
    %4 = vector.load %arg3[%c0_2, %c0_3] : memref<16x128xbf16, #tpu.memory_space<vmem>>, vector<16x128xbf16>
    %c0_4 = arith.constant 0 : index
    %c0_5 = arith.constant 0 : index
    %5 = vector.load %arg4[%c0_4, %c0_5] : memref<128x128xbf16, #tpu.memory_space<vmem>>, vector<128x128xbf16>
    %cst = arith.constant dense<0.000000e+00> : vector<16x128xf32>
    %6 = tpu.matmul %4, %5, %cst {dimension_numbers = #tpu.dot_dimension_numbers<[1], [0], [0], [1], [0, 0, 1, 1], [], []>} : vector<16x128xbf16>, vector<128x128xbf16>, vector<16x128xf32> -> vector<16x128xf32>
    %7 = arith.addf %3, %6 : vector<16x128xf32>
    %c0_6 = arith.constant 0 : index
    %c0_7 = arith.constant 0 : index
    %8 = vector.load %arg7[%c0_6, %c0_7] : memref<16x128xf32, #tpu.memory_space<vmem>>, vector<16x128xf32>
    tpu.vector_store %arg7[%c0_6, %c0_7], %7 {strides = array<i32>} : memref<16x128xf32, #tpu.memory_space<vmem>>, vector<16x128xf32>,
    %c0_i32_8 = arith.constant 0 : i32
    %9 = arith.cmpi eq, %arg2, %c0_i32_8 : i32
    %10 = arith.extui %9 : i1 to i32
    %c0_i32_9 = arith.constant 0 : i32
    %11 = arith.cmpi ne, %10, %c0_i32_9 : i32
    scf.if %11 {
      %c0_10 = arith.constant 0 : index
      %c0_11 = arith.constant 0 : index
      %12 = vector.load %arg7[%c0_10, %c0_11] : memref<16x128xf32, #tpu.memory_space<vmem>>, vector<16x128xf32>
      %c0_12 = arith.constant 0 : index
      %c0_13 = arith.constant 0 : index
      %13 = vector.load %arg5[%c0_12, %c0_13] : memref<1x128xf32, #tpu.memory_space<vmem>>, vector<1x128xf32>
      %14 = vector.broadcast %13 : vector<1x128xf32> to vector<16x128xf32>
      %15 = arith.addf %12, %14 : vector<16x128xf32>
      %cst_14 = arith.constant 0.000000e+00 : f32
      %16 = vector.broadcast %cst_14 : f32 to vector<16x128xf32>
      %17 = arith.subf %16, %15 : vector<16x128xf32>
      %18 = math.exp %17 : vector<16x128xf32>
      %cst_15 = arith.constant 1.000000e+00 : f32
      %19 = vector.broadcast %cst_15 : f32 to vector<16x128xf32>
      %20 = arith.addf %19, %18 : vector<16x128xf32>
      %21 = tpu.reciprocal %20 {approx = true} : vector<16x128xf32> -> vector<16x128xf32>
      %c0_16 = arith.constant 0 : index
      %c0_17 = arith.constant 0 : index
      %22 = vector.load %arg6[%c0_16, %c0_17] : memref<16x128xf32, #tpu.memory_space<vmem>>, vector<16x128xf32>
      tpu.vector_store %arg6[%c0_16, %c0_17], %21 {strides = array<i32>} : memref<16x128xf32, #tpu.memory_space<vmem>>, vector<16x128xf32>,
    } else {
    }
    return
  }
  func.func @transform_0(%arg0: i32, %arg1: i32, %arg2: i32) -> (i32, i32) {
    %c0_i32 = arith.constant 0 : i32
    return %arg0, %arg2 : i32, i32
  }
  func.func @transform_1(%arg0: i32, %arg1: i32, %arg2: i32) -> (i32, i32) {
    %c0_i32 = arith.constant 0 : i32
    return %arg2, %arg1 : i32, i32
  }
  func.func @transform_2(%arg0: i32, %arg1: i32, %arg2: i32) -> (i32, i32) {
    %c0_i32 = arith.constant 0 : i32
    %c0_i32_0 = arith.constant 0 : i32
    return %c0_i32, %arg1 : i32, i32
  }
  func.func @transform_3(%arg0: i32, %arg1: i32, %arg2: i32) -> (i32, i32) {
    %c0_i32 = arith.constant 0 : i32
    return %arg0, %arg1 : i32, i32
  }
}

</mosaic_0001>

<llo_original>
// kernel: _encode_fn.1
$region0: #{_encode_fn.1}
  #allocation0 [shape = 'u32[]', space=smem, size = 0x4, offset = 0x4, fixed_abs, tag = 'smem constant byte address 0x4 - core index']
  #allocation1 [shape = 'u32[144,128]{1,0:T(1,128)}', space=vmem, size = 0x12000, scoped, tag = 'internal scratch']
  #allocation2 [shape = 'f32[16,128]{1,0:T(8,128)}', space=vmem, size = 0x2000, scoped, tag = 'scratch operand']
  %s0 = inlined_call_operand.vmem [shape: bf16[16,128], index: 0, kind: input, shape index: {}]
  %s1 = inlined_call_operand.hbm [shape: bf16[128,128], index: 1, kind: input, shape index: {}]
  %s2 = inlined_call_operand.vmem [shape: f32[1,128], index: 2, kind: input, shape index: {}]
  %s3 = inlined_call_operand.vmem [shape: f32[16,128], index: 3, kind: output, shape index: {}]
  %s4 = sld [smem:[#allocation0]]
  $region34: #{_encode_fn.1} parent=0
    _
  %s6 = ssub.s32 1, %s4
  %s7 = scalar_select 0, %s6, %s4
  $region1: #{_encode_fn.1} parent=0
    #allocation3 [shape = 'u8[32768]{0}', space=vmem, size = 0x8000, scoped, tag = 'input window, operand 1, single buffered']
    #allocation4 [shape = 's32[1]{0}', space=sflag, size = 0x4, scoped, tag = 'scoped memory for _encode_fn.1']
    %8 = vsyncpa [#allocation4], 0
    // Predicated region
    $region2: #{_encode_fn.1} parent=1 // pred_check
      _
    $region3: #{_encode_fn.1} parent=1 // pred_check_branch
      %10 = sbr.rel (0) target = $region5
    $region4: #{_encode_fn.1} parent=1 // pred_region
      _
    $region5: #{_encode_fn.1} parent=1 // pred_fallthru
      _
    // Predicated region
    $region6: #{_encode_fn.1} parent=1 // pred_check
      _
    $region7: #{_encode_fn.1} parent=1 // pred_check_branch
      %12 = sbr.rel (0) target = $region9
    $region8: #{_encode_fn.1} parent=1 // pred_region
      %s14 = ssub.s32 1024, 1024
      %15 = vsyncadd [#allocation4], %s14
      %s16 = sshll.u32 [#allocation3], 4
      %s17 = int_to_ptr.vmem [resolvable:$true] %s16
      %22 = dma.hbm_to_vmem [thread:$0]  %s1, 1024, %s17, [#allocation4], 64, 64, 4
    $region9: #{_encode_fn.1} parent=1 // pred_fallthru
      _
    // Predicated region
    $region10: #{_encode_fn.1} parent=1 // pred_check
      _
    $region11: #{_encode_fn.1} parent=1 // pred_check_branch
      %24 = sbr.rel (0) target = $region13
    $region12: #{_encode_fn.1} parent=1 // pred_region
      _
    $region13: #{_encode_fn.1} parent=1 // pred_fallthru
      _
    // Predicated region
    $region14: #{_encode_fn.1} parent=1 // pred_check
      _
    $region15: #{_encode_fn.1} parent=1 // pred_check_branch
      %26 = sbr.rel (0) target = $region17
    $region16: #{_encode_fn.1} parent=1 // pred_region
      %27 = dma.done [#allocation4], 1024
    $region17: #{_encode_fn.1} parent=1 // pred_fallthru
      _
    %p29 = scmp.eq.s32.totalorder 0, 0
    // Predicated region
    $region18: #{_encode_fn.1} parent=1 // pred_check
      %p30 = pneg %p29
    $region19: #{_encode_fn.1} parent=1 // pred_check_branch
      %32 = sbr.rel (%p30) target = $region21
    $region20: #{_encode_fn.1} parent=1 // pred_region
      %33 = vst [vmem:[#allocation2] sm:$0xff] 0.0
      %34 = vst [vmem:[#allocation2 + $0x8] sm:$0xff] 0.0
    $region21: #{_encode_fn.1} parent=1 // pred_fallthru
      _
    %v35 = vld [vmem:[#allocation2] sm:$0xff]
    %v36 = vld [vmem:[#allocation2 + $0x8] sm:$0xff]
    %v37 = vld [vmem:[%s0] sm:$0xf]
    %v38 = vld [vmem:[%s0 + $0x4] sm:$0xf]
    %v39 = vld [vmem:[#allocation3] sm:$0xf]
    %v40 = vld [vmem:[#allocation3 + $0x4] sm:$0xf]
    %v41 = vld [vmem:[#allocation3 + $0x8] sm:$0xf]
    %v42 = vld [vmem:[#allocation3 + $0xc] sm:$0xf]
    %v43 = vld [vmem:[#allocation3 + $0x10] sm:$0xf]
    %v44 = vld [vmem:[#allocation3 + $0x14] sm:$0xf]
    %v45 = vld [vmem:[#allocation3 + $0x18] sm:$0xf]
    %v46 = vld [vmem:[#allocation3 + $0x1c] sm:$0xf]
    %v47 = vld [vmem:[#allocation3 + $0x20] sm:$0xf]
    %v48 = vld [vmem:[#allocation3 + $0x24] sm:$0xf]
    %v49 = vld [vmem:[#allocation3 + $0x28] sm:$0xf]
    %v50 = vld [vmem:[#allocation3 + $0x2c] sm:$0xf]
    %v51 = vld [vmem:[#allocation3 + $0x30] sm:$0xf]
    %v52 = vld [vmem:[#allocation3 + $0x34] sm:$0xf]
    %v53 = vld [vmem:[#allocation3 + $0x38] sm:$0xf]
    %v54 = vld [vmem:[#allocation3 + $0x3c] sm:$0xf]
    %v57 = vunpack.c.l.b16 %v37
    %v58 = vunpack.c.l.b16 %v38
    %v59 = vpack.c.b16 %v58, %v57
    %v77 = vunpack.c.l.b16 %v39
    %v78 = vunpack.c.l.b16 %v40
    %v79 = vunpack.c.l.b16 %v41
    %v80 = vunpack.c.l.b16 %v42
    %v81 = vunpack.c.l.b16 %v43
    %v82 = vunpack.c.l.b16 %v44
    %v83 = vunpack.c.l.b16 %v45
    %v84 = vunpack.c.l.b16 %v46
    %v85 = vunpack.c.l.b16 %v47
    %v86 = vunpack.c.l.b16 %v48
    %v87 = vunpack.c.l.b16 %v49
    %v88 = vunpack.c.l.b16 %v50
    %v89 = vunpack.c.l.b16 %v51
    %v90 = vunpack.c.l.b16 %v52
    %v91 = vunpack.c.l.b16 %v53
    %v92 = vunpack.c.l.b16 %v54
    %v93 = vpack.c.b16 %v78, %v77
    %v94 = vpack.c.b16 %v80, %v79
    %v95 = vpack.c.b16 %v82, %v81
    %v96 = vpack.c.b16 %v84, %v83
    %v97 = vpack.c.b16 %v86, %v85
    %v98 = vpack.c.b16 %v88, %v87
    %v99 = vpack.c.b16 %v90, %v89
    %v100 = vpack.c.b16 %v92, %v91
    %109 = vmatprep.subr.bf16.mxu0 0
    %110 = vmatpush1.bf16.msra.mxu0 %v93
    %111 = vmatprep.subr.bf16.mxu0 0
    %112 = vmatpush1.bf16.msra.mxu0 %v94
    %113 = vmatprep.subr.bf16.mxu0 0
    %114 = vmatpush1.bf16.msra.mxu0 %v95
    %115 = vmatprep.subr.bf16.mxu0 0
    %116 = vmatpush1.bf16.msra.mxu0 %v96
    %117 = vmatprep.subr.bf16.mxu0 0
    %118 = vmatpush1.bf16.msra.mxu0 %v97
    %119 = vmatprep.subr.bf16.mxu0 0
    %120 = vmatpush1.bf16.msra.mxu0 %v98
    %121 = vmatprep.subr.bf16.mxu0 0
    %122 = vmatpush1.bf16.msra.mxu0 %v99
    %123 = vmatprep.subr.bf16.mxu0 0
    %124 = vmatpush1.bf16.msra.mxu0 %v100
    %125 = vmatprep.subr.bf16.mxu0 0
    %126 = vmatpush1.bf16.msra.mxu0 0
    %127 = vmatprep.subr.bf16.mxu0 0
    %128 = vmatpush1.bf16.msra.mxu0 0
    %129 = vmatprep.subr.bf16.mxu0 0
    %130 = vmatpush1.bf16.msra.mxu0 0
    %131 = vmatprep.subr.bf16.mxu0 0
    %132 = vmatpush1.bf16.msra.mxu0 0
    %133 = vmatprep.subr.bf16.mxu0 0
    %134 = vmatpush1.bf16.msra.mxu0 0
    %135 = vmatprep.subr.bf16.mxu0 0
    %136 = vmatpush1.bf16.msra.mxu0 0
    %137 = vmatprep.subr.bf16.mxu0 0
    %138 = vmatpush1.bf16.msra.mxu0 0
    %139 = vmatprep.subr.bf16.mxu0 0
    %140 = vmatpush1.bf16.msra.mxu0 0
    %141 = vmatprep.mubr.bf16.mxu0 0
    %142 = vmatmul.mubr.bf16.gmra.mrb[0].mxu0 %v59
    %v143 = vpop.f32.mrb[0].mxu0
    %v144 = vadd.f32 0.0, %v143
    %v145 = vpop.f32.mrb[0].mxu0
    %v146 = vpop.f32.mrb[0].mxu0
    %v147 = vadd.f32 0.0, %v146
    %v148 = vpop.f32.mrb[0].mxu0
    %149 = vdwg.mxu0
    %v150 = vadd.f32 %v35, %v144
    %v151 = vadd.f32 %v36, %v147
    %152 = vst [vmem:[#allocation2] sm:$0xff] %v150
    %153 = vst [vmem:[#allocation2 + $0x8] sm:$0xff] %v151
    // Predicated region
    $region22: #{_encode_fn.1} parent=1 // pred_check
      %p154 = pneg %p29
    $region23: #{_encode_fn.1} parent=1 // pred_check_branch
      %156 = sbr.rel (%p154) target = $region25
    $region24: #{_encode_fn.1} parent=1 // pred_region
      %v157 = vld [vmem:[#allocation2] sm:$0xff]
      %v158 = vld [vmem:[#allocation2 + $0x8] sm:$0xff]
      %v159 = vld [vmem:[%s2] sm:$0x1]
      %v161 = vlaneseq
      %v162 = vshrl.u32 %v161, 7
      %v163 = vsub.s32 0, %v162
      %v164 = vrot.slane %v159, %v163
      %v166 = vadd.f32 %v157, %v164
      %v167 = vadd.f32 %v158, %v164
      %v168 = vsub.f32 0.0, %v166
      %v169 = vsub.f32 0.0, %v167
      %v170 = vmul.f32 %v168, 1.442695
      %v171 = vpow.pop %v170
      %v172 = vmul.f32 %v169, 1.442695
      %v173 = vpow.pop %v172
      %v174 = vadd.f32 %v171, 1.0
      %v175 = vadd.f32 %v173, 1.0
      %v176 = vrcp.pop %v174
      %v177 = vrcp.pop %v175
      %178 = vst [vmem:[%s3] sm:$0xff] %v176
      %179 = vst [vmem:[%s3 + $0x8] sm:$0xff] %v177
    $region25: #{_encode_fn.1} parent=1 // pred_fallthru
      _
    // Predicated region
    $region26: #{_encode_fn.1} parent=1 // pred_check
      _
    $region27: #{_encode_fn.1} parent=1 // pred_check_branch
      %181 = sbr.rel (0) target = $region29
    $region28: #{_encode_fn.1} parent=1 // pred_region
      _
    $region29: #{_encode_fn.1} parent=1 // pred_fallthru
      _
    // Predicated region
    $region30: #{_encode_fn.1} parent=1 // pred_check
      _
    $region31: #{_encode_fn.1} parent=1 // pred_check_branch
      %183 = sbr.rel (0) target = $region33
    $region32: #{_encode_fn.1} parent=1 // pred_region
      _
    $region33: #{_encode_fn.1} parent=1 // pred_fallthru
      _
    %184 = vsyncpa [#allocation4], 1

</llo_original>
